<compile_context>
chip_gen: v6e
topology: v6e:2x2x1
jax: 0.10.0
libtpu: 0.0.40
codegen_flags: <defaults>
</compile_context>

<pallas_src>
import jax
import jax.numpy as jnp
import numpy as np
from jax.experimental import pallas as pl
from jax.experimental.pallas import tpu as pltpu


# ----------------------------------------------------------------------------- kernel


def _make_kernel(k_valid, k_out):
    lane_pad = k_out - k_valid

    def kernel(x_ref, w_ref, b_ref, attn_ref, pgen_ref, copy_ref, acc_ref):
        # x_ref:    (tS, B, E)     VMEM  decoder states (resident across the L sweep)
        # w_ref:    (1, E)         VMEM  p_gen_linear weight as a row vector
        # b_ref:    (1,)           SMEM  p_gen_linear bias (scalar path)
        # attn_ref: (tS, B, K)     VMEM  one attention map (L axis squeezed out)
        # pgen_ref: (tS, B, 1)     out   (written on the last L step)
        # copy_ref: (tS, B, K_out) out   (written on the last L step, lane-dense)
        # acc_ref:  (tS, B, K)     VMEM  f32 running sum over the L maps
        l = pl.program_id(1)
        a = attn_ref[...].astype(jnp.float32)

        @pl.when(l == 0)
        def _():
            acc_ref[...] = a

        @pl.when(l > 0)
        def _():
            acc_ref[...] += a

        @pl.when(l == pl.num_programs(1) - 1)
        def _():
            x = x_ref[...].astype(jnp.float32)                 # (tS, B, E)
            w = w_ref[...].astype(jnp.float32)                 # (1, E)
            b = b_ref[0].astype(jnp.float32)                   # scalar (SMEM)
            # Projection to one scalar per (seq, batch) row: VPU multiply +
            # XLU lane reduction; rides in slack slots under the DMA stream.
            logits = jnp.sum(x * w[jnp.newaxis], axis=-1, keepdims=True) + b
            p_gen = jax.nn.sigmoid(logits)                     # (tS, B, 1) f32
            pgen_ref[...] = p_gen.astype(pgen_ref.dtype)

            cw = (1.0 - p_gen) * acc_ref[...]                  # (tS, B, K) f32
            if lane_pad:
                cw = jnp.pad(cw, ((0, 0), (0, 0), (0, lane_pad)))
            copy_ref[...] = cw.astype(copy_ref.dtype)

    return kernel


# -------------------------------------------------------------------- tiling / VMEM model


def _round_up(v, m):
    return ((v + m - 1) // m) * m


def _tile_bytes(rows, cols, dtype):
    """Bytes of one (rows, cols) 2-D tile after TPU lane/sublane padding."""
    itemsize = jnp.dtype(dtype).itemsize
    pack = max(1, 4 // itemsize)                 # sub-32-bit dtypes pack along sublanes
    rows_p = _round_up(max(rows, 1), 8 * pack)
    cols_p = _round_up(max(cols, 1), 128)
    return rows_p * cols_p * itemsize


def _vmem_budget():
    """(working-set budget, vmem_limit_bytes) derived from the actual chip."""
    cap = None
    try:
        cap = getattr(pltpu.get_tpu_info(), "vmem_capacity_bytes", None)
    except Exception:
        cap = None
    if not cap or cap <= 0:
        cap = 64 * 1024 * 1024                   # conservative: v7x per-TensorCore VMEM
    vmem_limit = min((cap * 3) // 4, 64 * 1024 * 1024)   # 64 MiB on 128 MiB parts, 48 MiB on v7x
    budget = vmem_limit // 2                     # headroom for double-buffers + compiler temps
    return budget, vmem_limit


def _pick_seq_tile(S, B, E, K, K_out, x_dtype, attn_dtype, copy_dtype, pgen_dtype, budget):
    """Largest seq tile whose padded, double-buffered working set fits the budget."""
    per_s = (
        2 * _tile_bytes(B, K, attn_dtype)        # streamed attn slice, double-buffered
        + 2 * _tile_bytes(B, E, x_dtype)         # x block (resident, but 2 buffers allocated)
        + 2 * _tile_bytes(B, K_out, copy_dtype)  # copy output block
        + 2 * _tile_bytes(B, 1, pgen_dtype)      # p_gen output block
        + _tile_bytes(B, K, jnp.float32)         # f32 accumulator scratch
    )
    tS = max(1, budget // per_s)
    # Keep >= ~4 steps on the parallel seq axis so v7x's 2 TensorCores both get work
    # (and amortized step overhead stays negligible on single-TC v5e/v6e).
    tS = min(tS, max(1, pl.cdiv(S, min(4, S))))
    return min(tS, S)


# ----------------------------------------------------------------------------- wrapper


def transformer_copy_layer(x, attn_weight_list, weight, bias, *, copy_dtype=None):
    """Pallas forward for TransformerCopyLayer.

    Args:
      x:                (S, B, E)   decoder states
      attn_weight_list: (S, L, B, K) attention maps (summed over L)
      weight:           (1, E)     -- nn.Linear(E, 1).weight
      bias:             (1,)       -- nn.Linear(E, 1).bias
      copy_dtype:       optional override for the copy_weight output dtype
                        (e.g. bf16 to halve the output write stream); defaults
                        to result_type(x, attn) to match the PyTorch module.
    Returns:
      (p_gen (S, B, 1), copy_weight (S, B, K))
    """
    S, B, E = x.shape
    s2, L, b2, K = attn_weight_list.shape
    assert (s2, b2) == (S, B)

    pgen_dtype = x.dtype
    if copy_dtype is None:
        copy_dtype = jnp.result_type(x.dtype, attn_weight_list.dtype)

    # Lane-dense copy output: pad src_len up to a multiple of 128, slice back after.
    K_out = _round_up(K, 128)

    w_row = weight.reshape(1, E)
    b_vec = bias.reshape(1)

    budget, vmem_limit = _vmem_budget()
    tS = _pick_seq_tile(S, B, E, K, K_out,
                        x.dtype, attn_weight_list.dtype, copy_dtype, pgen_dtype, budget)
    num_s = pl.cdiv(S, tS)

    pgen, copy_p = pl.pallas_call(
        _make_kernel(K, K_out),
        out_shape=(
            jax.ShapeDtypeStruct((S, B, 1), pgen_dtype),
            jax.ShapeDtypeStruct((S, B, K_out), copy_dtype),
        ),
        grid=(num_s, L),
        in_specs=[
            pl.BlockSpec((tS, B, E), lambda i, l: (i, 0, 0)),               # x (fetched once per i)
            pl.BlockSpec((1, E), lambda i, l: (0, 0)),                      # weight row
            pl.BlockSpec(memory_space=pltpu.MemorySpace.SMEM),              # bias scalar
            pl.BlockSpec((tS, pl.Squeezed(), B, K), lambda i, l: (i, l, 0, 0)),  # attn slice l
        ],
        out_specs=(
            pl.BlockSpec((tS, B, 1), lambda i, l: (i, 0, 0)),
            pl.BlockSpec((tS, B, K_out), lambda i, l: (i, 0, 0)),
        ),
        scratch_shapes=[pltpu.VMEM((tS, B, K), jnp.float32)],               # running sum over L
        compiler_params=pltpu.CompilerParams(
            dimension_semantics=("parallel", "arbitrary"),
            vmem_limit_bytes=vmem_limit,
        ),
    )(x, w_row, b_vec, attn_weight_list)

    if K_out != K:
        copy_p = copy_p[..., :K]
    return pgen, copy_p


# ----------------------------------------------------------------------------- reference / test


def _reference(x, attn_weight_list, weight, bias):
    # Pure-JAX reference mirroring the PyTorch forward.
    p_gen = jax.nn.sigmoid(jnp.einsum("sbe,oe->sbo", x, weight) + bias)  # (S,B,1)
    copy_weight = attn_weight_list.sum(axis=1)                           # (S,B,K)
    copy_weight = (1.0 - p_gen) * copy_weight
    return p_gen, copy_weight


if __name__ == "__main__":
    # Small, deterministic example shapes.
    S, B, E = 8, 2, 32     # seq_len, batch, decoder_embed_dim
    L, K = 4, 128          # number of attention maps summed, src_len (lane-dense)

    key = jax.random.PRNGKey(0)
    kx, ka, kw, kb = jax.random.split(key, 4)

    x = jax.random.normal(kx, (S, B, E), dtype=jnp.float32)
    attn = jax.nn.softmax(
        jax.random.normal(ka, (S, L, B, K), dtype=jnp.float32), axis=-1
    )

    # nn.Linear(E, 1): weight (1, E), bias (1,) -- deterministic init.
    bound = 1.0 / np.sqrt(E)
    weight = jax.random.uniform(kw, (1, E), minval=-bound, maxval=bound,
                                dtype=jnp.float32)
    bias = jax.random.uniform(kb, (1,), minval=-bound, maxval=bound,
                              dtype=jnp.float32)

    p_gen, copy_weight = transformer_copy_layer(x, attn, weight, bias)
    p_gen = jax.block_until_ready(p_gen)
    copy_weight = jax.block_until_ready(copy_weight)

    p_ref, cw_ref = _reference(x, attn, weight, bias)
    assert p_gen.shape == (S, B, 1) and copy_weight.shape == (S, B, K)
    np.testing.assert_allclose(np.asarray(p_gen), np.asarray(p_ref),
                               rtol=1e-5, atol=1e-5)
    np.testing.assert_allclose(np.asarray(copy_weight), np.asarray(cw_ref),
                               rtol=1e-5, atol=1e-5)
    print("KERNEL_OK")
</pallas_src>

<mosaic_0001>
module attributes {stable_mosaic.version = 11 : i64} {
  func.func @kernel(%arg0: i32, %arg1: i32, %arg2: memref<2x2x32xf32, #tpu.memory_space<vmem>>, %arg3: memref<1x32xf32, #tpu.memory_space<vmem>>, %arg4: memref<1xf32, #tpu.memory_space<smem>>, %arg5: memref<2x1x2x128xf32, #tpu.memory_space<vmem>>, %arg6: memref<2x2x1xf32, #tpu.memory_space<vmem>>, %arg7: memref<2x2x128xf32, #tpu.memory_space<vmem>>, %arg8: memref<2x2x128xf32, #tpu.memory_space<vmem>>) attributes {dimension_semantics = [#tpu.dimension_semantics<parallel>, #tpu.dimension_semantics<arbitrary>], iteration_bounds = array<i64: 4, 4>, scalar_prefetch = 0 : i64, scratch_operands = 1 : i64, tpu.core_type = #tpu.core_type<tc>, window_params = [{transform_indices = @transform_0, window_bounds = array<i64: 2, 2, 32>}, {pipeline_mode = #tpu.pipeline_mode<synchronous>, transform_indices = @transform_1, window_bounds = array<i64: 1, 32>}, {transform_indices = @transform_2, window_bounds = array<i64: 1>}, {transform_indices = @transform_3, window_bounds = array<i64: 2, 1, 2, 128>}, {transform_indices = @transform_4, window_bounds = array<i64: 2, 2, 1>}, {transform_indices = @transform_5, window_bounds = array<i64: 2, 2, 128>}]} {
    %c0 = arith.constant 0 : index
    %c0_0 = arith.constant 0 : index
    %c0_1 = arith.constant 0 : index
    %c0_2 = arith.constant 0 : index
    %0 = vector.load %arg5[%c0, %c0_0, %c0_1, %c0_2] : memref<2x1x2x128xf32, #tpu.memory_space<vmem>>, vector<2x1x2x128xf32>
    %1 = vector.shape_cast %0 : vector<2x1x2x128xf32> to vector<2x2x128xf32>
    %c0_i32 = arith.constant 0 : i32
    %2 = arith.cmpi eq, %arg1, %c0_i32 : i32
    %3 = arith.extui %2 : i1 to i32
    %c0_i32_3 = arith.constant 0 : i32
    %4 = arith.cmpi ne, %3, %c0_i32_3 : i32
    scf.if %4 {
      %c0_7 = arith.constant 0 : index
      %c0_8 = arith.constant 0 : index
      %c0_9 = arith.constant 0 : index
      %11 = vector.load %arg8[%c0_7, %c0_8, %c0_9] : memref<2x2x128xf32, #tpu.memory_space<vmem>>, vector<2x2x128xf32>
      tpu.vector_store %arg8[%c0_7, %c0_8, %c0_9], %1 {strides = array<i32>} : memref<2x2x128xf32, #tpu.memory_space<vmem>>, vector<2x2x128xf32>,
    } else {
    }
    %c0_i32_4 = arith.constant 0 : i32
    %5 = arith.cmpi sgt, %arg1, %c0_i32_4 : i32
    %6 = arith.extui %5 : i1 to i32
    %c0_i32_5 = arith.constant 0 : i32
    %7 = arith.cmpi ne, %6, %c0_i32_5 : i32
    scf.if %7 {
      %c0_7 = arith.constant 0 : index
      %c0_8 = arith.constant 0 : index
      %c0_9 = arith.constant 0 : index
      %11 = vector.load %arg8[%c0_7, %c0_8, %c0_9] : memref<2x2x128xf32, #tpu.memory_space<vmem>>, vector<2x2x128xf32>
      %12 = arith.addf %11, %1 : vector<2x2x128xf32>
      %c0_10 = arith.constant 0 : index
      %c0_11 = arith.constant 0 : index
      %c0_12 = arith.constant 0 : index
      %13 = vector.load %arg8[%c0_10, %c0_11, %c0_12] : memref<2x2x128xf32, #tpu.memory_space<vmem>>, vector<2x2x128xf32>
      tpu.vector_store %arg8[%c0_10, %c0_11, %c0_12], %12 {strides = array<i32>} : memref<2x2x128xf32, #tpu.memory_space<vmem>>, vector<2x2x128xf32>,
    } else {
    }
    %c3_i32 = arith.constant 3 : i32
    %8 = arith.cmpi eq, %arg1, %c3_i32 : i32
    %9 = arith.extui %8 : i1 to i32
    %c0_i32_6 = arith.constant 0 : i32
    %10 = arith.cmpi ne, %9, %c0_i32_6 : i32
    scf.if %10 {
      %c0_7 = arith.constant 0 : index
      %c0_8 = arith.constant 0 : index
      %c0_9 = arith.constant 0 : index
      %11 = vector.load %arg2[%c0_7, %c0_8, %c0_9] : memref<2x2x32xf32, #tpu.memory_space<vmem>>, vector<2x2x32xf32>
      %c0_10 = arith.constant 0 : index
      %c0_11 = arith.constant 0 : index
      %12 = vector.load %arg3[%c0_10, %c0_11] : memref<1x32xf32, #tpu.memory_space<vmem>>, vector<1x32xf32>
      %c0_12 = arith.constant 0 : index
      %13 = memref.load %arg4[%c0_12] : memref<1xf32, #tpu.memory_space<smem>>
      %14 = vector.shape_cast %12 : vector<1x32xf32> to vector<1x1x32xf32>
      %15 = vector.broadcast %14 : vector<1x1x32xf32> to vector<2x2x32xf32>
      %16 = arith.mulf %11, %15 : vector<2x2x32xf32>
      %cst = arith.constant dense<0.000000e+00> : vector<2x2xf32>
      %17 = vector.multi_reduction <add>, %16, %cst [2] : vector<2x2x32xf32> to vector<2x2xf32>
      %18 = vector.shape_cast %17 : vector<2x2xf32> to vector<2x2x1xf32>
      %19 = vector.broadcast %13 : f32 to vector<2x2x1xf32>
      %20 = arith.addf %18, %19 : vector<2x2x1xf32>
      %21 = arith.negf %20 : vector<2x2x1xf32>
      %22 = math.exp %21 : vector<2x2x1xf32>
      %cst_13 = arith.constant 1.000000e+00 : f32
      %23 = vector.broadcast %cst_13 : f32 to vector<2x2x1xf32>
      %24 = arith.addf %23, %22 : vector<2x2x1xf32>
      %25 = arith.divf %23, %24 : vector<2x2x1xf32>
      %c0_14 = arith.constant 0 : index
      %c0_15 = arith.constant 0 : index
      %c0_16 = arith.constant 0 : index
      %26 = vector.load %arg6[%c0_14, %c0_15, %c0_16] : memref<2x2x1xf32, #tpu.memory_space<vmem>>, vector<2x2x1xf32>
      tpu.vector_store %arg6[%c0_14, %c0_15, %c0_16], %25 {strides = array<i32>} : memref<2x2x1xf32, #tpu.memory_space<vmem>>, vector<2x2x1xf32>,
      %cst_17 = arith.constant 1.000000e+00 : f32
      %27 = vector.broadcast %cst_17 : f32 to vector<2x2x1xf32>
      %28 = arith.subf %27, %25 : vector<2x2x1xf32>
      %c0_18 = arith.constant 0 : index
      %c0_19 = arith.constant 0 : index
      %c0_20 = arith.constant 0 : index
      %29 = vector.load %arg8[%c0_18, %c0_19, %c0_20] : memref<2x2x128xf32, #tpu.memory_space<vmem>>, vector<2x2x128xf32>
      %30 = vector.broadcast %28 : vector<2x2x1xf32> to vector<2x2x128xf32>
      %31 = arith.mulf %30, %29 : vector<2x2x128xf32>
      %c0_21 = arith.constant 0 : index
      %c0_22 = arith.constant 0 : index
      %c0_23 = arith.constant 0 : index
      %32 = vector.load %arg7[%c0_21, %c0_22, %c0_23] : memref<2x2x128xf32, #tpu.memory_space<vmem>>, vector<2x2x128xf32>
      tpu.vector_store %arg7[%c0_21, %c0_22, %c0_23], %31 {strides = array<i32>} : memref<2x2x128xf32, #tpu.memory_space<vmem>>, vector<2x2x128xf32>,
    } else {
    }
    return
  }
  func.func @transform_0(%arg0: i32, %arg1: i32) -> (i32, i32, i32) {
    %c0_i32 = arith.constant 0 : i32
    %c0_i32_0 = arith.constant 0 : i32
    %c0_i32_1 = arith.constant 0 : i32
    return %arg0, %c0_i32, %c0_i32_0 : i32, i32, i32
  }
  func.func @transform_1(%arg0: i32, %arg1: i32) -> (i32, i32) {
    %c0_i32 = arith.constant 0 : i32
    %c0_i32_0 = arith.constant 0 : i32
    %c0_i32_1 = arith.constant 0 : i32
    return %c0_i32, %c0_i32_0 : i32, i32
  }
  func.func @transform_2(%arg0: i32, %arg1: i32) -> i32 {
    %c0_i32 = arith.constant 0 : i32
    %c0_i32_0 = arith.constant 0 : i32
    return %c0_i32 : i32
  }
  func.func @transform_3(%arg0: i32, %arg1: i32) -> (i32, i32, i32, i32) {
    %c0_i32 = arith.constant 0 : i32
    %c0_i32_0 = arith.constant 0 : i32
    %c0_i32_1 = arith.constant 0 : i32
    return %arg0, %arg1, %c0_i32, %c0_i32_0 : i32, i32, i32, i32
  }
  func.func @transform_4(%arg0: i32, %arg1: i32) -> (i32, i32, i32) {
    %c0_i32 = arith.constant 0 : i32
    %c0_i32_0 = arith.constant 0 : i32
    %c0_i32_1 = arith.constant 0 : i32
    return %arg0, %c0_i32, %c0_i32_0 : i32, i32, i32
  }
  func.func @transform_5(%arg0: i32, %arg1: i32) -> (i32, i32, i32) {
    %c0_i32 = arith.constant 0 : i32
    %c0_i32_0 = arith.constant 0 : i32
    %c0_i32_1 = arith.constant 0 : i32
    return %arg0, %c0_i32, %c0_i32_0 : i32, i32, i32
  }
}

</mosaic_0001>

<llo_original>
// kernel: tpu_custom_call.1
$region0: #{tpu_custom_call.1}
  #allocation0 [shape = 'u32[]', space=smem, size = 0x4, offset = 0x4, fixed_abs, tag = 'smem constant byte address 0x4 - core index']
  #allocation1 [shape = 'u32[144,128]{1,0:T(1,128)}', space=vmem, size = 0x12000, scoped, tag = 'internal scratch']
  #allocation2 [shape = 'f32[2,2,128]{2,1,0:T(2,128)}', space=vmem, size = 0x800, scoped, tag = 'scratch operand']
  #allocation3 [shape = 'f32[1]{0:T(128)S(6)}', space=smem, size = 0x200, scoped, tag = 'scoped memory for tpu_custom_call.1']
  %s0 = inlined_call_operand.hbm [shape: f32[8,2,32], index: 0, kind: input, shape index: {}]
  %s1 = inlined_call_operand.vmem [shape: f32[1,32], index: 1, kind: input, shape index: {}]
  %s2 = inlined_call_operand.<no memory space> [shape: f32[1], index: 2, kind: input, shape index: {}]
  %s3 = inlined_call_operand.hbm [shape: f32[8,4,2,128], index: 3, kind: input, shape index: {}]
  %s4 = inlined_call_operand.vmem [shape: f32[8,2,1], index: 4, kind: output, shape index: {0}]
  %s5 = inlined_call_operand.hbm [shape: f32[8,2,128], index: 5, kind: output, shape index: {1}]
  %6 = xla_tuple %s4, %s5
  %s7 = sld [smem:[#allocation0]]
  $region77: #{tpu_custom_call.1} parent=0
    _
  %s9 = ssub.s32 1, %s7
  %s10 = scalar_select 0, %s9, %s7
  %11 = sst [smem:[#allocation3]] %s2
  $region1: #{tpu_custom_call.1} parent=0
    #allocation4 [shape = 'u8[4096]{0}', space=vmem, size = 0x1000, scoped, tag = 'input window, operand 0']
    #allocation5 [shape = 's32[2]{0}', space=sflag, size = 0x8, scoped, tag = 'scoped memory for tpu_custom_call.1']
    #allocation6 [shape = 's32[2]{0}', space=sflag, size = 0x8, scoped, tag = 'scoped memory for tpu_custom_call.1']
    #allocation7 [shape = 'u8[4096]{0}', space=vmem, size = 0x1000, scoped, tag = 'input window, operand 3']
    #allocation8 [shape = 's32[2]{0}', space=sflag, size = 0x8, scoped, tag = 'scoped memory for tpu_custom_call.1']
    #allocation9 [shape = 'u8[4096]{0}', space=vmem, size = 0x1000, scoped, tag = 'output window, operand 1']
    %12 = vsyncpa [#allocation5], 0
    %s13 = scalar_lea.sflag [#allocation5], 1
    %14 = vsyncpa %s13, 0
    %15 = vsyncpa [#allocation8], 0
    %s16 = scalar_lea.sflag [#allocation8], 1
    %17 = vsyncpa %s16, 0
    %18 = vsyncpa [#allocation6], 0
    %s19 = scalar_lea.sflag [#allocation6], 1
    %20 = vsyncpa %s19, 0
    loop: start=0, step=1, limit=18
    $region2: #{tpu_custom_call.1} parent=1 // loop_pre_header
      _
    $region3: #{tpu_custom_call.1} parent=1 // loop_header
      %s22 = sphi 0, %s26
      %p23 = scmp.ge.s32.totalorder %s22, 18
      %s29 = sphi 0, %s41
      %s30 = sphi 0, %s37
      %s31 = sphi 0, %s29
      %s32 = sphi 0, %s30
      %s33 = sphi 0, %s31
      %s34 = sphi 0, %s32
      %s44 = sphi 0, %s46
      %s47 = sphi 0, %s44
      %s48 = sphi 0, %s47
      %s64 = sphi 0, %s48
      %s68 = sphi 0, %s68
      %s70 = sphi 0, %s68
      %s71 = sphi 0, %s70
      %s85 = sphi 0, %s71
      %s89 = sphi 0, %s89
      %s91 = sphi 0, %s89
      %s92 = sphi 0, %s91
      %s106 = sphi 0, %s92
      %s114 = sphi 0, %s116
      %s117 = sphi 0, %s114
      %s118 = sphi 0, %s117
      %s134 = sphi 0, %s118
      %s140 = sphi 0, %s142
      %s143 = sphi 0, %s140
      %s144 = sphi 0, %s143
      %s160 = sphi 0, %s144
      %s166 = sphi 0, %s168
      %s169 = sphi 0, %s166
      %s170 = sphi 0, %s169
      %s186 = sphi 0, %s170
    $region4: #{tpu_custom_call.1} parent=1 // loop_header_branch
      %25 = sbr.rel (%p23) target = $region8
    $region5: #{tpu_custom_call.1} parent=1 // loop_body
      %s27 = ssub.s32 %s22, 1
      %s28 = ssub.s32 %s22, 2
      %s35 = sadd.s32 1, %s30
      %p36 = scmp.ge.s32.totalorder %s35, 4
      %s37 = scalar_select %p36, 0, %s35
      %s38 = sadd.s32 1, %s29
      %s39 = scalar_select %p36, %s38, %s29
      %p40 = scmp.ge.s32.totalorder %s39, 4
      %s41 = scalar_select %p40, 0, %s39
      %s42 = ssub.s32 %s29, %s41
      %p43 = scmp.eq.s32.totalorder %s42, 0
      %s45 = sadd.s32 %s44, 1
      %s46 = scalar_select %p43, %s44, %s45
      %p49 = pneg %p43
      %p50 = scmp.eq.s32.totalorder %s22, 15
      %p51 = por %p49, %p50
      %p52 = scmp.ne.s32.totalorder %s44, %s47
      %p53 = scmp.eq.s32.totalorder %s22, 0
      %p54 = por %p52, %p53
      %p55 = scmp.ne.s32.totalorder %s44, %s47
      %p56 = scmp.eq.s32.totalorder %s27, 15
      %p57 = por %p55, %p56
      %p58 = scmp.ne.s32.totalorder %s47, %s48
      %p59 = scmp.eq.s32.totalorder %s27, 0
      %p60 = por %p58, %p59
      %p61 = scmp.ne.s32.totalorder %s47, %s48
      %p62 = scmp.eq.s32.totalorder %s28, 15
      %p63 = por %p61, %p62
      %p65 = scmp.ne.s32.totalorder %s48, %s64
      %p66 = scmp.eq.s32.totalorder %s28, 0
      %p67 = por %p65, %p66
      %s69 = sadd.s32 %s68, 1
      %p72 = scmp.eq.s32.totalorder %s22, 15
      %p73 = scmp.ne.s32.totalorder %s68, %s70
      %p74 = scmp.eq.s32.totalorder %s22, 0
      %p75 = por %p73, %p74
      %p76 = scmp.ne.s32.totalorder %s68, %s70
      %p77 = scmp.eq.s32.totalorder %s27, 15
      %p78 = por %p76, %p77
      %p79 = scmp.ne.s32.totalorder %s70, %s71
      %p80 = scmp.eq.s32.totalorder %s27, 0
      %p81 = por %p79, %p80
      %p82 = scmp.ne.s32.totalorder %s70, %s71
      %p83 = scmp.eq.s32.totalorder %s28, 15
      %p84 = por %p82, %p83
      %p86 = scmp.ne.s32.totalorder %s71, %s85
      %p87 = scmp.eq.s32.totalorder %s28, 0
      %p88 = por %p86, %p87
      %s90 = sadd.s32 %s89, 1
      %p93 = scmp.eq.s32.totalorder %s22, 15
      %p94 = scmp.ne.s32.totalorder %s89, %s91
      %p95 = scmp.eq.s32.totalorder %s22, 0
      %p96 = por %p94, %p95
      %p97 = scmp.ne.s32.totalorder %s89, %s91
      %p98 = scmp.eq.s32.totalorder %s27, 15
      %p99 = por %p97, %p98
      %p100 = scmp.ne.s32.totalorder %s91, %s92
      %p101 = scmp.eq.s32.totalorder %s27, 0
      %p102 = por %p100, %p101
      %p103 = scmp.ne.s32.totalorder %s91, %s92
      %p104 = scmp.eq.s32.totalorder %s28, 15
      %p105 = por %p103, %p104
      %p107 = scmp.ne.s32.totalorder %s92, %s106
      %p108 = scmp.eq.s32.totalorder %s28, 0
      %p109 = por %p107, %p108
      %s110 = ssub.s32 %s29, %s41
      %s111 = ssub.s32 %s30, %s37
      %s112 = sor.u32 %s110, %s111
      %p113 = scmp.eq.s32.totalorder %s112, 0
      %s115 = sadd.s32 %s114, 1
      %s116 = scalar_select %p113, %s114, %s115
      %p119 = pneg %p113
      %p120 = scmp.eq.s32.totalorder %s22, 15
      %p121 = por %p119, %p120
      %p122 = scmp.ne.s32.totalorder %s114, %s117
      %p123 = scmp.eq.s32.totalorder %s22, 0
      %p124 = por %p122, %p123
      %p125 = scmp.ne.s32.totalorder %s114, %s117
      %p126 = scmp.eq.s32.totalorder %s27, 15
      %p127 = por %p125, %p126
      %p128 = scmp.ne.s32.totalorder %s117, %s118
      %p129 = scmp.eq.s32.totalorder %s27, 0
      %p130 = por %p128, %p129
      %p131 = scmp.ne.s32.totalorder %s117, %s118
      %p132 = scmp.eq.s32.totalorder %s28, 15
      %p133 = por %p131, %p132
      %p135 = scmp.ne.s32.totalorder %s118, %s134
      %p136 = scmp.eq.s32.totalorder %s28, 0
      %p137 = por %p135, %p136
      %s138 = ssub.s32 %s29, %s41
      %p139 = scmp.eq.s32.totalorder %s138, 0
      %s141 = sadd.s32 %s140, 1
      %s142 = scalar_select %p139, %s140, %s141
      %p145 = pneg %p139
      %p146 = scmp.eq.s32.totalorder %s22, 15
      %p147 = por %p145, %p146
      %p148 = scmp.ne.s32.totalorder %s140, %s143
      %p149 = scmp.eq.s32.totalorder %s22, 0
      %p150 = por %p148, %p149
      %p151 = scmp.ne.s32.totalorder %s140, %s143
      %p152 = scmp.eq.s32.totalorder %s27, 15
      %p153 = por %p151, %p152
      %p154 = scmp.ne.s32.totalorder %s143, %s144
      %p155 = scmp.eq.s32.totalorder %s27, 0
      %p156 = por %p154, %p155
      %p157 = scmp.ne.s32.totalorder %s143, %s144
      %p158 = scmp.eq.s32.totalorder %s28, 15
      %p159 = por %p157, %p158
      %p161 = scmp.ne.s32.totalorder %s144, %s160
      %p162 = scmp.eq.s32.totalorder %s28, 0
      %p163 = por %p161, %p162
      %s164 = ssub.s32 %s29, %s41
      %p165 = scmp.eq.s32.totalorder %s164, 0
      %s167 = sadd.s32 %s166, 1
      %s168 = scalar_select %p165, %s166, %s167
      %p171 = pneg %p165
      %p172 = scmp.eq.s32.totalorder %s22, 15
      %p173 = por %p171, %p172
      %p174 = scmp.ne.s32.totalorder %s166, %s169
      %p175 = scmp.eq.s32.totalorder %s22, 0
      %p176 = por %p174, %p175
      %p177 = scmp.ne.s32.totalorder %s166, %s169
      %p178 = scmp.eq.s32.totalorder %s27, 15
      %p179 = por %p177, %p178
      %p180 = scmp.ne.s32.totalorder %s169, %s170
      %p181 = scmp.eq.s32.totalorder %s27, 0
      %p182 = por %p180, %p181
      %p183 = scmp.ne.s32.totalorder %s169, %s170
      %p184 = scmp.eq.s32.totalorder %s28, 15
      %p185 = por %p183, %p184
      %p187 = scmp.ne.s32.totalorder %s170, %s186
      %p188 = scmp.eq.s32.totalorder %s28, 0
      %p189 = por %p187, %p188
      %p190 = scmp.le.s32.totalorder 1, %s22
      %p191 = scmp.lt.s32.totalorder %s22, 17
      %p192 = pnand %p190, %p191
      %p193 = pneg %p192
      // Predicated region
      $region9: #{tpu_custom_call.1} parent=5 // pred_check
        _
      $region10: #{tpu_custom_call.1} parent=5 // pred_check_branch
        %195 = sbr.rel (%p192) target = $region12
      $region11: #{tpu_custom_call.1} parent=5 // pred_region
        %s196 = ssub.s32 %s22, 1
        // Predicated region
        $region13: #{tpu_custom_call.1} parent=11 // pred_check
          %p197 = pneg %p81
        $region14: #{tpu_custom_call.1} parent=11 // pred_check_branch
          %199 = sbr.rel (%p197) target = $region16
        $region15: #{tpu_custom_call.1} parent=11 // pred_region
          _
        $region16: #{tpu_custom_call.1} parent=11 // pred_fallthru
          _
        // Predicated region
        $region17: #{tpu_custom_call.1} parent=11 // pred_check
          %p200 = pneg %p102
        $region18: #{tpu_custom_call.1} parent=11 // pred_check_branch
          %202 = sbr.rel (%p200) target = $region20
        $region19: #{tpu_custom_call.1} parent=11 // pred_region
          _
        $region20: #{tpu_custom_call.1} parent=11 // pred_fallthru
          _
      $region12: #{tpu_custom_call.1} parent=5 // pred_fallthru
        _
      %p203 = scmp.lt.s32.totalorder %s22, 16
      // Predicated region
      $region21: #{tpu_custom_call.1} parent=5 // pred_check
        %p204 = pneg %p203
      $region22: #{tpu_custom_call.1} parent=5 // pred_check_branch
        %206 = sbr.rel (%p204) target = $region24
      $region23: #{tpu_custom_call.1} parent=5 // pred_region
        // Predicated region
        $region25: #{tpu_custom_call.1} parent=23 // pred_check
          %p207 = pneg %p54
        $region26: #{tpu_custom_call.1} parent=23 // pred_check_branch
          %209 = sbr.rel (%p207) target = $region28
        $region27: #{tpu_custom_call.1} parent=23 // pred_region
          %s210 = sand.u32 %s44, 1
          %s211 = scalar_lea.sflag [#allocation5], %s210
          %s212 = sand.u32 %s44, 1
          %s213 = smul.addr %s212, 4
          %s214 = scalar_lea.vmem [#allocation4], %s213
          %s215 = smul.u32 2, %s29
          %s217 = ssub.s32 64, 64
          %218 = vsyncadd %s211, %s217
          %s219 = smul.addr %s215, 32
          %s220 = scalar_lea.hbm %s0, %s219
          %s221 = sshll.u32 %s214, 4
          %s222 = int_to_ptr.vmem [resolvable:$true] %s221
          %227 = dma.hbm_to_vmem [thread:$0]  %s220, 64, %s222, %s211, 32, 32, 2
        $region28: #{tpu_custom_call.1} parent=23 // pred_fallthru
          _
        // Predicated region
        $region29: #{tpu_custom_call.1} parent=23 // pred_check
          %p228 = pneg %p124
        $region30: #{tpu_custom_call.1} parent=23 // pred_check_branch
          %230 = sbr.rel (%p228) target = $region32
        $region31: #{tpu_custom_call.1} parent=23 // pred_region
          %s231 = sand.u32 %s114, 1
          %s232 = scalar_lea.sflag [#allocation8], %s231
          %s233 = sand.u32 %s114, 1
          %s234 = smul.addr %s233, 4
          %s235 = scalar_lea.vmem [#allocation7], %s234
          %s236 = smul.u32 2, %s29
          %s238 = ssub.s32 64, 64
          %239 = vsyncadd %s232, %s238
          %s240 = smul.addr %s236, 4
          %s241 = sadd.s32 %s30, %s240
          %s242 = smul.addr %s241, 32
          %s243 = scalar_lea.hbm %s3, %s242
          %s244 = sshll.u32 %s235, 4
          %s245 = int_to_ptr.vmem [resolvable:$true] %s244
          %250 = dma.hbm_to_vmem [thread:$0]  %s243, 64, %s245, %s232, 128, 32, 2
        $region32: #{tpu_custom_call.1} parent=23 // pred_fallthru
          _
      $region24: #{tpu_custom_call.1} parent=5 // pred_fallthru
        _
      %p251 = scmp.le.s32.totalorder 1, %s22
      %p252 = scmp.lt.s32.totalorder %s22, 17
      %p253 = pnand %p251, %p252
      %p254 = pneg %p253
      // Predicated region
      $region33: #{tpu_custom_call.1} parent=5 // pred_check
        _
      $region34: #{tpu_custom_call.1} parent=5 // pred_check_branch
        %256 = sbr.rel (%p253) target = $region36
      $region35: #{tpu_custom_call.1} parent=5 // pred_region
        %s257 = ssub.s32 %s22, 1
        %s258 = sand.u32 %s47, 1
        %s259 = scalar_lea.sflag [#allocation5], %s258
        %s260 = sand.u32 %s47, 1
        %s261 = smul.addr %s260, 4
        %s262 = scalar_lea.vmem [#allocation4], %s261
        // Predicated region
        $region37: #{tpu_custom_call.1} parent=35 // pred_check
          %p263 = pneg %p60
        $region38: #{tpu_custom_call.1} parent=35 // pred_check_branch
          %265 = sbr.rel (%p263) target = $region40
        $region39: #{tpu_custom_call.1} parent=35 // pred_region
          %266 = dma.done %s259, 64
        $region40: #{tpu_custom_call.1} parent=35 // pred_fallthru
          _
        %s267 = sand.u32 %s117, 1
        %s268 = scalar_lea.sflag [#allocation8], %s267
        %s269 = sand.u32 %s117, 1
        %s270 = smul.addr %s269, 4
        %s271 = scalar_lea.vmem [#allocation7], %s270
        // Predicated region
        $region41: #{tpu_custom_call.1} parent=35 // pred_check
          %p272 = pneg %p130
        $region42: #{tpu_custom_call.1} parent=35 // pred_check_branch
          %274 = sbr.rel (%p272) target = $region44
        $region43: #{tpu_custom_call.1} parent=35 // pred_region
          %275 = dma.done %s268, 64
        $region44: #{tpu_custom_call.1} parent=35 // pred_fallthru
          _
        %s276 = sand.u32 %s47, 1
        %s277 = scalar_lea.sflag [#allocation5], %s276
        %s278 = sand.u32 %s47, 1
        %s279 = smul.addr %s278, 4
        %s280 = scalar_lea.vmem [#allocation4], %s279
        %p281 = pneg %p60
        %p282 = pneg %p57
        %p283 = pneg %p81
        %p284 = pneg %p78
        %p285 = pneg %p102
        %p286 = pneg %p99
        %s287 = sand.u32 %s117, 1
        %s288 = scalar_lea.sflag [#allocation8], %s287
        %s289 = sand.u32 %s117, 1
        %s290 = smul.addr %s289, 4
        %s291 = scalar_lea.vmem [#allocation7], %s290
        %p292 = pneg %p130
        %p293 = pneg %p127
        %p294 = pneg %p156
        %p295 = pneg %p153
        %s296 = smul.u32 2, %s31
        %p297 = scmp.lt.s32.totalorder %s296, 7
        %s298 = scalar_select %p297, %s296, 7
        %s299 = smul.addr %s298, 2
        %s300 = scalar_lea.vmem %s4, %s299
        %p301 = pneg %p182
        %p302 = pneg %p179
        %s303 = sand.u32 %s169, 1
        %s304 = scalar_lea.sflag [#allocation6], %s303
        %s305 = sand.u32 %s169, 1
        %s306 = smul.addr %s305, 4
        %s307 = scalar_lea.vmem [#allocation9], %s306
        %s308 = smul.u32 2, %s31
        %s309 = smul.u32 2, %s31
        %s310 = smul.u32 2, %s31
        %p311 = scmp.lt.s32.totalorder %s310, 7
        %s312 = scalar_select %p311, %s310, 7
        %s313 = smul.addr %s312, 2
        %s314 = scalar_lea.vmem %s4, %s313
        %s315 = smul.u32 2, %s31
        %s316 = smul.u32 2, %s31
        %v317 = vld [vmem:[%s271] sm:$0x3]
        %v318 = vld [vmem:[%s271 + $0x2] sm:$0x3]
        %p319 = scmp.eq.s32.totalorder %s32, 0
        // Predicated region
        $region45: #{tpu_custom_call.1} parent=35 // pred_check
          %p320 = pneg %p319
        $region46: #{tpu_custom_call.1} parent=35 // pred_check_branch
          %322 = sbr.rel (%p320) target = $region48
        $region47: #{tpu_custom_call.1} parent=35 // pred_region
          %323 = vst [vmem:[#allocation2] sm:$0x3] %v317
          %324 = vst [vmem:[#allocation2 + $0x2] sm:$0x3] %v318
        $region48: #{tpu_custom_call.1} parent=35 // pred_fallthru
          _
        %p325 = scmp.gt.s32.totalorder %s32, 0
        // Predicated region
        $region49: #{tpu_custom_call.1} parent=35 // pred_check
          %p326 = pneg %p325
        $region50: #{tpu_custom_call.1} parent=35 // pred_check_branch
          %328 = sbr.rel (%p326) target = $region52
        $region51: #{tpu_custom_call.1} parent=35 // pred_region
          %v329 = vld [vmem:[#allocation2] sm:$0x3]
          %v330 = vld [vmem:[#allocation2 + $0x2] sm:$0x3]
          %v331 = vadd.f32 %v329, %v317
          %v332 = vadd.f32 %v330, %v318
          %333 = vst [vmem:[#allocation2] sm:$0x3] %v331
          %334 = vst [vmem:[#allocation2 + $0x2] sm:$0x3] %v332
        $region52: #{tpu_custom_call.1} parent=35 // pred_fallthru
          _
        %p335 = scmp.eq.s32.totalorder %s32, 3
        // Predicated region
        $region53: #{tpu_custom_call.1} parent=35 // pred_check
          %p336 = pneg %p335
        $region54: #{tpu_custom_call.1} parent=35 // pred_check_branch
          %338 = sbr.rel (%p336) target = $region56
        $region55: #{tpu_custom_call.1} parent=35 // pred_region
          %v339 = vld [vmem:[%s262] sm:$0x3]
          %v340 = vld [vmem:[%s262 + $0x2] sm:$0x3]
          %v341 = vld [vmem:[%s1] sm:$0x1]
          %s342 = sld [smem:[#allocation3]]
          %v344 = vlaneseq
          %v345 = vshrl.u32 %v344, 7
          %v346 = vsub.s32 0, %v345
          %v347 = vrot.slane %v341, %v346
          %v349 = vmul.f32 %v339, %v347
          %v350 = vmul.f32 %v340, %v347
          %vm351 = vcmask 254976
          %v352 = vsel %vm351, %v349, 0.0
          %353 = vadd.xlane.f32.xlu0 %v352
          %v354 = vpop.xlane.xlu0 %353
          %v355 = vsel %vm351, %v350, 0.0
          %356 = vadd.xlane.f32.xlu0 %v355
          %v357 = vpop.xlane.xlu0 %356
          %v358 = vstv %s342
          %v359 = vadd.f32 %v354, %v358
          %v360 = vadd.f32 %v357, %v358
          %v361 = vxor.u32 %v359, 2147483648
          %v362 = vxor.u32 %v360, 2147483648
          %v363 = vmul.f32 %v361, 1.442695
          %v364 = vpow.pop %v363
          %v365 = vmul.f32 %v362, 1.442695
          %v366 = vpow.pop %v365
          %v367 = vadd.f32 %v364, 1.0
          %v368 = vadd.f32 %v366, 1.0
          %v369 = vrcp.pop %v367
          %v370 = vmul.f32 1.0, %v369
          %v371 = vrcp.pop %v368
          %v372 = vmul.f32 1.0, %v371
          %vm373 = vcmask 1024
          %374 = vst.msk [vmem:[%s314] sm:$0x3] %vm373, %v370
          %375 = vst.msk [vmem:[%s314 + $0x2] sm:$0x3] %vm373, %v372
          %v376 = vsub.f32 1.0, %v370
          %v377 = vsub.f32 1.0, %v372
          %v378 = vld [vmem:[#allocation2] sm:$0x3]
          %v379 = vld [vmem:[#allocation2 + $0x2] sm:$0x3]
          %v380 = vmul.f32 %v376, %v378
          %v381 = vmul.f32 %v377, %v379
          %382 = vst [vmem:[%s307] sm:$0x3] %v380
          %383 = vst [vmem:[%s307 + $0x2] sm:$0x3] %v381
        $region56: #{tpu_custom_call.1} parent=35 // pred_fallthru
          _
        %s384 = smul.u32 2, %s31
        %p385 = scmp.lt.s32.totalorder %s384, 7
        %s386 = scalar_select %p385, %s384, 7
        %s387 = smul.addr %s386, 2
        %s388 = scalar_lea.vmem %s4, %s387
        %s389 = sand.u32 %s169, 1
        %s390 = scalar_lea.sflag [#allocation6], %s389
        %s391 = sand.u32 %s169, 1
        %s392 = smul.addr %s391, 4
        %s393 = scalar_lea.vmem [#allocation9], %s392
        // Predicated region
        $region57: #{tpu_custom_call.1} parent=35 // pred_check
          %p394 = pneg %p153
        $region58: #{tpu_custom_call.1} parent=35 // pred_check_branch
          %396 = sbr.rel (%p394) target = $region60
        $region59: #{tpu_custom_call.1} parent=35 // pred_region
          %s397 = smul.u32 2, %s31
        $region60: #{tpu_custom_call.1} parent=35 // pred_fallthru
          _
        // Predicated region
        $region61: #{tpu_custom_call.1} parent=35 // pred_check
          %p398 = pneg %p179
        $region62: #{tpu_custom_call.1} parent=35 // pred_check_branch
          %400 = sbr.rel (%p398) target = $region64
        $region63: #{tpu_custom_call.1} parent=35 // pred_region
          %s401 = smul.u32 2, %s31
          %s403 = ssub.s32 64, 64
          %404 = vsyncadd %s390, %s403
          %s405 = smul.addr %s401, 32
          %s406 = scalar_lea.hbm %s5, %s405
          %s407 = sshll.u32 %s393, 4
          %s408 = int_to_ptr.vmem [resolvable:$true] %s407
          %413 = dma.vmem_to_hbm [thread:$0]  %s408, 64, %s406, %s390, 32, 32, 2
        $region64: #{tpu_custom_call.1} parent=35 // pred_fallthru
          _
      $region36: #{tpu_custom_call.1} parent=5 // pred_fallthru
        _
      %p414 = scmp.le.s32.totalorder 2, %s22
      // Predicated region
      $region65: #{tpu_custom_call.1} parent=5 // pred_check
        %p415 = pneg %p414
      $region66: #{tpu_custom_call.1} parent=5 // pred_check_branch
        %417 = sbr.rel (%p415) target = $region68
      $region67: #{tpu_custom_call.1} parent=5 // pred_region
        %s418 = ssub.s32 %s22, 2
        // Predicated region
        $region69: #{tpu_custom_call.1} parent=67 // pred_check
          %p419 = pneg %p159
        $region70: #{tpu_custom_call.1} parent=67 // pred_check_branch
          %421 = sbr.rel (%p419) target = $region72
        $region71: #{tpu_custom_call.1} parent=67 // pred_region
          %s422 = smul.u32 2, %s33
          %p423 = scmp.lt.s32.totalorder %s422, 7
          %s424 = scalar_select %p423, %s422, 7
          %s425 = smul.addr %s424, 2
          %s426 = scalar_lea.vmem %s4, %s425
        $region72: #{tpu_custom_call.1} parent=67 // pred_fallthru
          _
        // Predicated region
        $region73: #{tpu_custom_call.1} parent=67 // pred_check
          %p427 = pneg %p185
        $region74: #{tpu_custom_call.1} parent=67 // pred_check_branch
          %429 = sbr.rel (%p427) target = $region76
        $region75: #{tpu_custom_call.1} parent=67 // pred_region
          %s430 = sand.u32 %s170, 1
          %s431 = scalar_lea.sflag [#allocation6], %s430
          %s432 = sand.u32 %s170, 1
          %s433 = smul.addr %s432, 4
          %s434 = scalar_lea.vmem [#allocation9], %s433
          %435 = dma.done %s431, 64
        $region76: #{tpu_custom_call.1} parent=67 // pred_fallthru
          _
      $region68: #{tpu_custom_call.1} parent=5 // pred_fallthru
        _
    $region6: #{tpu_custom_call.1} parent=1 // loop_footer
      %s26 = sadd.s32 1, %s22
    $region7: #{tpu_custom_call.1} parent=1 // loop_footer_branch
      %21 = sbr.rel target = $region3
    $region8: #{tpu_custom_call.1} parent=1 // loop_exit
      _
    %436 = vsyncpa [#allocation5], 1
    %s437 = scalar_lea.sflag [#allocation5], 1
    %438 = vsyncpa %s437, 1
    %439 = vsyncpa [#allocation8], 1
    %s440 = scalar_lea.sflag [#allocation8], 1
    %441 = vsyncpa %s440, 1
    %442 = vsyncpa [#allocation6], 1
    %s443 = scalar_lea.sflag [#allocation6], 1
    %444 = vsyncpa %s443, 1

</llo_original>
